<compile_context>
chip_gen: v7x
topology: tpu7x:2x2x1
jax: 0.10.0
libtpu: 0.0.40
codegen_flags: <defaults>
</compile_context>

<pallas_src>
import functools

import jax
import jax.numpy as jnp
from jax.experimental import pallas as pl
from jax.experimental.pallas import tpu as pltpu

_PAIRWISE_EPS = 1e-6  # torch.nn.functional.pairwise_distance default eps


def _round_up(x, m):
    return (x + m - 1) // m * m


def _loss_kernel_lanes(x1_ref, x2_ref, w_ref, out_ref, *, margin):
    """Lane-dense path: features on sublanes, batch on lanes.

    x1_ref/x2_ref: [D, TN]; w_ref: [2, TN] (row0 = label, row1 = 1-label,
    both zeroed on padded columns); out_ref: [1, TN] per-example loss.
    """
    x1 = x1_ref[...].astype(jnp.float32)
    x2 = x2_ref[...].astype(jnp.float32)
    sim_w = w_ref[0:1, :].astype(jnp.float32)            # [1, TN]
    dis_w = w_ref[1:2, :].astype(jnp.float32)            # [1, TN]

    diff = x1 - x2 + _PAIRWISE_EPS
    sq = jnp.sum(diff * diff, axis=0, keepdims=True)     # [1, TN] = dist^2
    dist = jnp.sqrt(sq)                                   # only needed for hinge
    hinge = jnp.maximum(margin - dist, 0.0)

    out_ref[...] = sim_w * sq + dis_w * (hinge * hinge)


def _loss_kernel_rows(x1_ref, x2_ref, w_ref, out_ref, *, margin):
    """Row-tiled path for D >= 128.

    x1_ref/x2_ref: [TM, D]; w_ref: [TM, 2]; out_ref: [TM, 1] per-example loss.
    """
    x1 = x1_ref[...].astype(jnp.float32)
    x2 = x2_ref[...].astype(jnp.float32)
    sim_w = w_ref[:, 0:1].astype(jnp.float32)             # [TM, 1]
    dis_w = w_ref[:, 1:2].astype(jnp.float32)             # [TM, 1]

    diff = x1 - x2 + _PAIRWISE_EPS
    sq = jnp.sum(diff * diff, axis=1, keepdims=True)      # [TM, 1] = dist^2
    dist = jnp.sqrt(sq)
    hinge = jnp.maximum(margin - dist, 0.0)

    out_ref[...] = sim_w * sq + dis_w * (hinge * hinge)


def contrastive_loss(output1, output2, label=None, margin=1.0):
    """Pallas TPU implementation of ContrastiveLoss.forward."""
    b, d = output1.shape

    if label is None:
        # Matches torch: [1]*(N//2) + [0]*(N//2) (even-batch assumption).
        label = jnp.concatenate(
            [jnp.ones((b // 2,), jnp.float32),
             jnp.zeros((b - b // 2,), jnp.float32)]
        )
    label = label.astype(jnp.float32).reshape(b)
    sim_w = label          # weight on dist^2
    dis_w = 1.0 - label    # weight on hinge^2

    itemsize = jnp.dtype(output1.dtype).itemsize
    # Budget for the two double-buffered input streams (well under the scoped
    # VMEM limit on v5e/v6e/v7x).
    input_budget = 8 * 1024 * 1024

    compiler_params = pltpu.CompilerParams(
        dimension_semantics=("parallel",),
        vmem_limit_bytes=32 * 1024 * 1024,
    )

    if d < 128:
        # ---- lane-dense path: transpose so batch sits on the lane axis ----
        tn = (input_budget // (d * itemsize * 4)) // 128 * 128
        tn = max(128, min(8192, tn))
        tn = min(tn, _round_up(b, 128))
        b_pad = _round_up(b, tn)
        num_tiles = b_pad // tn
        pad = b_pad - b

        x1 = jnp.pad(output1, ((0, pad), (0, 0))).T       # [D, B_pad]
        x2 = jnp.pad(output2, ((0, pad), (0, 0))).T       # [D, B_pad]
        w = jnp.stack(
            [jnp.pad(sim_w, (0, pad)), jnp.pad(dis_w, (0, pad))], axis=0
        )                                                  # [2, B_pad]

        kernel = functools.partial(_loss_kernel_lanes, margin=float(margin))
        per_example = pl.pallas_call(
            kernel,
            out_shape=jax.ShapeDtypeStruct((1, b_pad), jnp.float32),
            grid=(num_tiles,),
            in_specs=[
                pl.BlockSpec((d, tn), lambda i: (0, i)),
                pl.BlockSpec((d, tn), lambda i: (0, i)),
                pl.BlockSpec((2, tn), lambda i: (0, i)),
            ],
            out_specs=pl.BlockSpec((1, tn), lambda i: (0, i)),
            compiler_params=compiler_params,
        )(x1, x2, w)
    else:
        # ---- row-tiled path for wide feature dims ----
        tm = (input_budget // (d * itemsize * 4)) // 8 * 8
        tm = max(8, min(1024, tm))
        tm = min(tm, _round_up(b, 8))
        b_pad = _round_up(b, tm)
        num_tiles = b_pad // tm
        pad = b_pad - b

        x1 = jnp.pad(output1, ((0, pad), (0, 0)))          # [B_pad, D]
        x2 = jnp.pad(output2, ((0, pad), (0, 0)))          # [B_pad, D]
        w = jnp.stack(
            [jnp.pad(sim_w, (0, pad)), jnp.pad(dis_w, (0, pad))], axis=1
        )                                                   # [B_pad, 2]

        kernel = functools.partial(_loss_kernel_rows, margin=float(margin))
        per_example = pl.pallas_call(
            kernel,
            out_shape=jax.ShapeDtypeStruct((b_pad, 1), jnp.float32),
            grid=(num_tiles,),
            in_specs=[
                pl.BlockSpec((tm, d), lambda i: (i, 0)),
                pl.BlockSpec((tm, d), lambda i: (i, 0)),
                pl.BlockSpec((tm, 2), lambda i: (i, 0)),
            ],
            out_specs=pl.BlockSpec((tm, 1), lambda i: (i, 0)),
            compiler_params=compiler_params,
        )(x1, x2, w)

    # Padded rows have zero weights -> contribute exactly zero.
    return jnp.sum(per_example) / (b * 2.0)


def _reference_loss(output1, output2, label=None, margin=1.0):
    b = output1.shape[0]
    if label is None:
        label = jnp.concatenate(
            [jnp.ones((b // 2,), jnp.float32),
             jnp.zeros((b - b // 2,), jnp.float32)]
        )
    label = label.astype(jnp.float32)
    dist = jnp.sqrt(jnp.sum((output1 - output2 + _PAIRWISE_EPS) ** 2, axis=1))
    sim = label * dist ** 2
    dis = (1.0 - label) * jnp.maximum(margin - dist, 0.0) ** 2
    return jnp.mean(sim + dis) / 2.0


if __name__ == "__main__":
    key = jax.random.PRNGKey(0)
    k1, k2, k3, k4, k5 = jax.random.split(key, 5)

    # Case 1: the module's canonical shape, default label path, lane-dense kernel.
    batch, feat = 8, 32
    o1 = jax.random.normal(k1, (batch, feat), dtype=jnp.float32)
    o2 = jax.random.normal(k2, (batch, feat), dtype=jnp.float32)
    loss1 = contrastive_loss(o1, o2, label=None, margin=1.0)
    jax.block_until_ready(loss1)
    ref1 = _reference_loss(o1, o2, label=None, margin=1.0)
    assert jnp.allclose(loss1, ref1, rtol=1e-5, atol=1e-6), (loss1, ref1)

    # Case 2: wide features + explicit label + ragged batch, row-tiled kernel.
    batch2, feat2 = 12, 256
    o3 = jax.random.normal(k3, (batch2, feat2), dtype=jnp.float32)
    o4 = jax.random.normal(k4, (batch2, feat2), dtype=jnp.float32)
    lab = (jax.random.uniform(k5, (batch2,)) > 0.5).astype(jnp.float32)
    loss2 = contrastive_loss(o3, o4, label=lab, margin=1.0)
    jax.block_until_ready(loss2)
    ref2 = _reference_loss(o3, o4, label=lab, margin=1.0)
    assert jnp.allclose(loss2, ref2, rtol=1e-5, atol=1e-6), (loss2, ref2)

    print("KERNEL_OK")
</pallas_src>

<mosaic_0001>
module attributes {stable_mosaic.version = 11 : i64} {
  func.func @_loss_kernel_lanes(%arg0: i32, %arg1: memref<32x128xf32, #tpu.memory_space<vmem>>, %arg2: memref<32x128xf32, #tpu.memory_space<vmem>>, %arg3: memref<2x128xf32, #tpu.memory_space<vmem>>, %arg4: memref<1x128xf32, #tpu.memory_space<vmem>>) attributes {dimension_semantics = [#tpu.dimension_semantics<parallel>], iteration_bounds = array<i64: 1>, scalar_prefetch = 0 : i64, scratch_operands = 0 : i64, tpu.core_type = #tpu.core_type<tc>, window_params = [{transform_indices = @transform_0, window_bounds = array<i64: 32, 128>}, {transform_indices = @transform_1, window_bounds = array<i64: 32, 128>}, {transform_indices = @transform_2, window_bounds = array<i64: 2, 128>}, {transform_indices = @transform_3, window_bounds = array<i64: 1, 128>}]} {
    %c0 = arith.constant 0 : index
    %c0_0 = arith.constant 0 : index
    %0 = vector.load %arg1[%c0, %c0_0] : memref<32x128xf32, #tpu.memory_space<vmem>>, vector<32x128xf32>
    %c0_1 = arith.constant 0 : index
    %c0_2 = arith.constant 0 : index
    %1 = vector.load %arg2[%c0_1, %c0_2] : memref<32x128xf32, #tpu.memory_space<vmem>>, vector<32x128xf32>
    %c0_3 = arith.constant 0 : index
    %c0_4 = arith.constant 0 : index
    %2 = vector.load %arg3[%c0_3, %c0_4] : memref<2x128xf32, #tpu.memory_space<vmem>>, vector<1x128xf32>
    %c1 = arith.constant 1 : index
    %c0_5 = arith.constant 0 : index
    %3 = vector.load %arg3[%c1, %c0_5] : memref<2x128xf32, #tpu.memory_space<vmem>>, vector<1x128xf32>
    %4 = arith.subf %0, %1 : vector<32x128xf32>
    %cst = arith.constant 9.99999997E-7 : f32
    %5 = vector.broadcast %cst : f32 to vector<32x128xf32>
    %6 = arith.addf %4, %5 : vector<32x128xf32>
    %7 = arith.mulf %6, %6 : vector<32x128xf32>
    %cst_6 = arith.constant dense<0.000000e+00> : vector<128xf32>
    %8 = vector.multi_reduction <add>, %7, %cst_6 [0] : vector<32x128xf32> to vector<128xf32>
    %9 = vector.shape_cast %8 : vector<128xf32> to vector<1x128xf32>
    %10 = math.sqrt %9 : vector<1x128xf32>
    %cst_7 = arith.constant 1.000000e+00 : f32
    %11 = vector.broadcast %cst_7 : f32 to vector<1x128xf32>
    %12 = arith.subf %11, %10 : vector<1x128xf32>
    %cst_8 = arith.constant 0.000000e+00 : f32
    %13 = vector.broadcast %cst_8 : f32 to vector<1x128xf32>
    %14 = arith.maximumf %12, %13 : vector<1x128xf32>
    %15 = arith.mulf %2, %9 : vector<1x128xf32>
    %16 = arith.mulf %14, %14 : vector<1x128xf32>
    %17 = arith.mulf %3, %16 : vector<1x128xf32>
    %18 = arith.addf %15, %17 : vector<1x128xf32>
    %c0_9 = arith.constant 0 : index
    %c0_10 = arith.constant 0 : index
    %19 = vector.load %arg4[%c0_9, %c0_10] : memref<1x128xf32, #tpu.memory_space<vmem>>, vector<1x128xf32>
    tpu.vector_store %arg4[%c0_9, %c0_10], %18 {strides = array<i32>} : memref<1x128xf32, #tpu.memory_space<vmem>>, vector<1x128xf32>,
    return
  }
  func.func @transform_0(%arg0: i32) -> (i32, i32) {
    %c0_i32 = arith.constant 0 : i32
    %c0_i32_0 = arith.constant 0 : i32
    return %c0_i32, %arg0 : i32, i32
  }
  func.func @transform_1(%arg0: i32) -> (i32, i32) {
    %c0_i32 = arith.constant 0 : i32
    %c0_i32_0 = arith.constant 0 : i32
    return %c0_i32, %arg0 : i32, i32
  }
  func.func @transform_2(%arg0: i32) -> (i32, i32) {
    %c0_i32 = arith.constant 0 : i32
    %c0_i32_0 = arith.constant 0 : i32
    return %c0_i32, %arg0 : i32, i32
  }
  func.func @transform_3(%arg0: i32) -> (i32, i32) {
    %c0_i32 = arith.constant 0 : i32
    %c0_i32_0 = arith.constant 0 : i32
    return %c0_i32, %arg0 : i32, i32
  }
}

</mosaic_0001>

<llo_original>
// kernel: tpu_custom_call.1
$region0: #{tpu_custom_call.1}
  #allocation0 [shape = 'u32[]', space=smem, size = 0x4, offset = 0x4, fixed_abs, tag = 'smem constant byte address 0x4 - core index']
  #allocation1 [shape = 'u32[144,128]{1,0:T(1,128)}', space=vmem, size = 0x12000, scoped, tag = 'internal scratch']
  %s0 = inlined_call_operand.hbm [shape: f32[32,128], index: 0, kind: input, shape index: {}]
  %s1 = inlined_call_operand.hbm [shape: f32[32,128], index: 1, kind: input, shape index: {}]
  %s2 = inlined_call_operand.vmem [shape: f32[2,128], index: 2, kind: input, shape index: {}]
  %s3 = inlined_call_operand.hbm [shape: f32[1,128], index: 3, kind: output, shape index: {}]
  %s4 = sld [smem:[#allocation0]]
  $region30: #{tpu_custom_call.1} parent=0
    _
  %s6 = ssub.s32 1, %s4
  %s7 = scalar_select 0, %s6, %s4
  $region1: #{tpu_custom_call.1} parent=0
    #allocation2 [shape = 'u8[16384]{0}', space=vmem, size = 0x4000, scoped, tag = 'input window, operand 0, single buffered']
    #allocation3 [shape = 's32[1]{0}', space=sflag, size = 0x4, scoped, tag = 'scoped memory for tpu_custom_call.1']
    #allocation4 [shape = 's32[1]{0}', space=sflag, size = 0x4, scoped, tag = 'scoped memory for tpu_custom_call.1']
    #allocation5 [shape = 'u8[16384]{0}', space=vmem, size = 0x4000, scoped, tag = 'input window, operand 1, single buffered']
    #allocation6 [shape = 's32[1]{0}', space=sflag, size = 0x4, scoped, tag = 'scoped memory for tpu_custom_call.1']
    #allocation7 [shape = 'u8[512]{0}', space=vmem, size = 0x400, scoped, tag = 'output window, operand 0, single buffered']
    %8 = vsyncpa [#allocation3], 0
    %9 = vsyncpa [#allocation6], 0
    %10 = vsyncpa [#allocation4], 0
    // Predicated region
    $region2: #{tpu_custom_call.1} parent=1 // pred_check
      _
    $region3: #{tpu_custom_call.1} parent=1 // pred_check_branch
      %12 = sbr.rel (0) target = $region5
    $region4: #{tpu_custom_call.1} parent=1 // pred_region
      %s14 = ssub.s32 512, 512
      %15 = vsyncadd [#allocation3], %s14
      %s16 = sshll.u32 [#allocation2], 4
      %s17 = int_to_ptr.vmem [resolvable:$true] %s16
      %22 = dma.hbm_to_vmem [thread:$0]  %s0, 512, %s17, [#allocation3], 128, 128, 8
    $region5: #{tpu_custom_call.1} parent=1 // pred_fallthru
      _
    // Predicated region
    $region6: #{tpu_custom_call.1} parent=1 // pred_check
      _
    $region7: #{tpu_custom_call.1} parent=1 // pred_check_branch
      %24 = sbr.rel (0) target = $region9
    $region8: #{tpu_custom_call.1} parent=1 // pred_region
      %s26 = ssub.s32 512, 512
      %27 = vsyncadd [#allocation6], %s26
      %s28 = sshll.u32 [#allocation5], 4
      %s29 = int_to_ptr.vmem [resolvable:$true] %s28
      %34 = dma.hbm_to_vmem [thread:$0]  %s1, 512, %s29, [#allocation6], 128, 128, 8
    $region9: #{tpu_custom_call.1} parent=1 // pred_fallthru
      _
    // Predicated region
    $region10: #{tpu_custom_call.1} parent=1 // pred_check
      _
    $region11: #{tpu_custom_call.1} parent=1 // pred_check_branch
      %36 = sbr.rel (0) target = $region13
    $region12: #{tpu_custom_call.1} parent=1 // pred_region
      _
    $region13: #{tpu_custom_call.1} parent=1 // pred_fallthru
      _
    // Predicated region
    $region14: #{tpu_custom_call.1} parent=1 // pred_check
      _
    $region15: #{tpu_custom_call.1} parent=1 // pred_check_branch
      %38 = sbr.rel (0) target = $region17
    $region16: #{tpu_custom_call.1} parent=1 // pred_region
      %39 = dma.done [#allocation3], 512
    $region17: #{tpu_custom_call.1} parent=1 // pred_fallthru
      _
    // Predicated region
    $region18: #{tpu_custom_call.1} parent=1 // pred_check
      _
    $region19: #{tpu_custom_call.1} parent=1 // pred_check_branch
      %41 = sbr.rel (0) target = $region21
    $region20: #{tpu_custom_call.1} parent=1 // pred_region
      %42 = dma.done [#allocation6], 512
    $region21: #{tpu_custom_call.1} parent=1 // pred_fallthru
      _
    %v43 = vld [vmem:[#allocation2] sm:$0xff]
    %v44 = vld [vmem:[#allocation2 + $0x8] sm:$0xff]
    %v45 = vld [vmem:[#allocation2 + $0x10] sm:$0xff]
    %v46 = vld [vmem:[#allocation2 + $0x18] sm:$0xff]
    %v47 = vld [vmem:[#allocation5] sm:$0xff]
    %v48 = vld [vmem:[#allocation5 + $0x8] sm:$0xff]
    %v49 = vld [vmem:[#allocation5 + $0x10] sm:$0xff]
    %v50 = vld [vmem:[#allocation5 + $0x18] sm:$0xff]
    %v51 = vld [vmem:[%s2] sm:$0x1]
    %v52 = vld [vmem:[%s2 + $0x1] sm:$0x1]
    %v53 = vsub.f32 %v43, %v47
    %v54 = vsub.f32 %v44, %v48
    %v55 = vsub.f32 %v45, %v49
    %v56 = vsub.f32 %v46, %v50
    %v57 = vadd.f32 %v53, 1e-06
    %v58 = vadd.f32 %v54, 1e-06
    %v59 = vadd.f32 %v55, 1e-06
    %v60 = vadd.f32 %v56, 1e-06
    %v61 = vmul.f32 %v57, %v57
    %v62 = vmul.f32 %v58, %v58
    %v63 = vmul.f32 %v59, %v59
    %v64 = vmul.f32 %v60, %v60
    %v65 = vadd.f32 %v61, %v62
    %v66 = vadd.f32 %v65, %v63
    %v67 = vadd.f32 %v66, %v64
    %v68 = vrot.slane %v67, 4
    %v69 = vadd.f32 %v67, %v68
    %v70 = vrot.slane %v69, 2
    %v71 = vadd.f32 %v69, %v70
    %v72 = vrot.slane %v71, 1
    %v73 = vadd.f32 %v71, %v72
    %v74 = vrsqrt.pop %v73
    %v75 = vmul.f32 %v73, %v74
    %vm76 = vcmp.eq.f32.partialorder %v73, inf
    %v77 = vsel %vm76, %v73, %v75
    %vm78 = vcmp.eq.f32.partialorder %v73, 0.0
    %v79 = vand.u32 %v73, 2147483648
    %v80 = vsel %vm78, %v79, %v77
    %v81 = vsub.f32 1.0, %v80
    %v82 = vmax.f32 %v81, 0.0
    %v83 = vmul.f32 %v51, %v73
    %v84 = vmul.f32 %v82, %v82
    %v85 = vmul.f32 %v52, %v84
    %v86 = vadd.f32 %v83, %v85
    %87 = vst [vmem:[#allocation7] sm:$0x1] %v86
    // Predicated region
    $region22: #{tpu_custom_call.1} parent=1 // pred_check
      _
    $region23: #{tpu_custom_call.1} parent=1 // pred_check_branch
      %89 = sbr.rel (0) target = $region25
    $region24: #{tpu_custom_call.1} parent=1 // pred_region
      %s91 = ssub.s32 16, 16
      %92 = vsyncadd [#allocation4], %s91
      %s94 = sshll.u32 [#allocation7], 4
      %s95 = int_to_ptr.vmem [resolvable:$true] %s94
      %97 = dma.vmem_to_hbm [thread:$0]  %s95, 16, %s3, [#allocation4]
    $region25: #{tpu_custom_call.1} parent=1 // pred_fallthru
      _
    // Predicated region
    $region26: #{tpu_custom_call.1} parent=1 // pred_check
      _
    $region27: #{tpu_custom_call.1} parent=1 // pred_check_branch
      %99 = sbr.rel (0) target = $region29
    $region28: #{tpu_custom_call.1} parent=1 // pred_region
      %100 = dma.done [#allocation4], 16
    $region29: #{tpu_custom_call.1} parent=1 // pred_fallthru
      _
    %101 = vsyncpa [#allocation3], 1
    %102 = vsyncpa [#allocation6], 1
    %103 = vsyncpa [#allocation4], 1

</llo_original>
